<compile_context>
chip_gen: v6e
topology: v6e:2x2x1
jax: 0.10.0
libtpu: 0.0.40
codegen_flags: <defaults>
</compile_context>

<pallas_src>
import math

import jax
import jax.numpy as jnp
from jax.experimental import pallas as pl
from jax.experimental.pallas import tpu as pltpu


def _lst_kernel(a_ref, x_ref, o_ref):
    """o[:, 0, :] = sum_j a[j] * x[:, j, :]   (exact f32, j unrolled).

    a_ref: SMEM (J,)       per-day scalar weights
    x_ref: VMEM (TB, J, TM) lane-dense slab of (batch-tile, all days, columns)
    o_ref: VMEM (TB, 1, TM)
    """
    J = x_ref.shape[1]
    acc = a_ref[0] * x_ref[:, 0, :].astype(jnp.float32)
    for j in range(1, J):  # J is small & static: unrolled scalar*vector FMA chain
        acc = acc + a_ref[j] * x_ref[:, j, :].astype(jnp.float32)
    o_ref[:, 0, :] = acc.astype(o_ref.dtype)


def _round_up(x, m):
    return ((x + m - 1) // m) * m


def lst_forward(user_loc_embed_seq, a, *,
                vmem_budget_bytes=12 << 20,   # double-buffer budget (x + out); < v5e 16 MiB scoped default
                target_x_bytes=4 << 20,       # per-grid-step x traffic target (near-roofline on v5e/v6e/v7x)
                min_pallas_bytes=1 << 20):
    """user_loc_embed_seq: [B, J, U, H]; a: [J, 1] or [J] -> [B, U, H] f32."""
    x = jnp.asarray(user_loc_embed_seq, jnp.float32)
    B, J, U, H = x.shape
    a_flat = jnp.asarray(a, jnp.float32).reshape(J)
    M = U * H

    # Tiny problems: pallas_call + pipeline fixed costs dominate; XLA's fused VPU
    # code is as fast.  (The __main__ test passes min_pallas_bytes=0 to force the
    # kernel path.)
    if B * J * M * 4 < min_pallas_bytes:
        return jnp.einsum("j,bjuh->buh", a_flat, x)

    # Lane-dense flatten + pad M to a multiple of 128: keeps every store an
    # unmasked full-lane vst and keeps the tiled/pipelined path for ragged M.
    M128 = _round_up(M, 128)
    x2 = x.reshape(B, J, M)
    if M128 != M:
        x2 = jnp.pad(x2, ((0, 0), (0, 0), (0, M128 - M)))

    # ---- Tile selection -----------------------------------------------------
    # Double-buffered VMEM footprint per step: 2 * TB * TM * 4 * (J + 1)
    #   (x block TB*J*TM*4 and out block TB*1*TM*4, each 2-buffered).
    tm_cap = max(128, (vmem_budget_bytes // (2 * 4 * (J + 1))) // 128 * 128)
    TM = min(M128, tm_cap)
    # Grow the batch tile until each step carries >= target_x_bytes of x traffic
    # (amortizes the ~0.35 us/step fixed overhead when M is small), within budget.
    tb_target = max(1, -(-target_x_bytes // (J * TM * 4)))          # ceil div
    tb_vmem = max(1, vmem_budget_bytes // (2 * TM * 4 * (J + 1)))
    TB = min(B, tb_target, tb_vmem)

    # v7x has 2 TensorCores: keep >= 2 grid steps whenever possible so the
    # ("parallel","parallel") axes can shard across them.
    if pl.cdiv(B, TB) * pl.cdiv(M128, TM) < 2:
        if M128 >= 256:
            TM = _round_up(M128 // 2, 128)
        elif B >= 2:
            TB = (B + 1) // 2

    grid = (pl.cdiv(B, TB), pl.cdiv(M128, TM))

    out = pl.pallas_call(
        _lst_kernel,
        out_shape=jax.ShapeDtypeStruct((B, 1, M128), jnp.float32),
        grid_spec=pl.GridSpec(
            grid=grid,
            in_specs=[
                # Day weights: tiny, resident as SMEM scalars (no vreg broadcast
                # or cross-sublane reduce needed in the kernel).
                pl.BlockSpec(memory_space=pltpu.MemorySpace.SMEM),
                # x: TB batch rows x all J days x TM lane-dense columns.
                pl.BlockSpec((TB, J, TM), lambda b, m: (b, 0, m)),
            ],
            out_specs=pl.BlockSpec((TB, 1, TM), lambda b, m: (b, 0, m)),
        ),
        compiler_params=pltpu.CompilerParams(
            dimension_semantics=("parallel", "parallel")),
    )(a_flat, x2)

    return out[:, 0, :M].reshape(B, U, H)


def _xavier_uniform(key, shape, gain=1.0):
    # PyTorch xavier_uniform_ on a 2-D tensor: fan_in = shape[1], fan_out = shape[0].
    fan_in, fan_out = shape[1], shape[0]
    bound = gain * math.sqrt(6.0 / (fan_in + fan_out))
    return jax.random.uniform(key, shape, jnp.float32, minval=-bound, maxval=bound)


if __name__ == "__main__":
    # Small shapes consistent with the module: batch, x_day, u_2v, hidden_dim.
    batch, x_day, u_2v, hidden = 2, 7, 8, 32

    key = jax.random.PRNGKey(0)
    kx, ka = jax.random.split(key, 2)

    x = jax.random.normal(kx, (batch, x_day, u_2v, hidden), jnp.float32)
    a = _xavier_uniform(ka, (x_day, 1), gain=1.0)   # nn.init.xavier_uniform_(gain=1.0)

    # Force the Pallas path even at this tiny test size.
    out = lst_forward(x, a, min_pallas_bytes=0)
    jax.block_until_ready(out)
    assert out.shape == (batch, u_2v, hidden)

    # Reference: out[b] = sum_j a[j] * x[b, j]
    ref = jnp.sum(a.reshape(1, x_day, 1, 1) * x, axis=1)
    assert jnp.allclose(out, ref, rtol=1e-5, atol=1e-5)

    print("KERNEL_OK")
</pallas_src>

<mosaic_0001>
module attributes {stable_mosaic.version = 11 : i64} {
  func.func @_lst_kernel(%arg0: i32, %arg1: i32, %arg2: memref<7xf32, #tpu.memory_space<smem>>, %arg3: memref<2x7x128xf32, #tpu.memory_space<vmem>>, %arg4: memref<2x1x128xf32, #tpu.memory_space<vmem>>) attributes {dimension_semantics = [#tpu.dimension_semantics<parallel>, #tpu.dimension_semantics<parallel>], iteration_bounds = array<i64: 1, 2>, scalar_prefetch = 0 : i64, scratch_operands = 0 : i64, tpu.core_type = #tpu.core_type<tc>, window_params = [{transform_indices = @transform_0, window_bounds = array<i64: 7>}, {transform_indices = @transform_1, window_bounds = array<i64: 2, 7, 128>}, {transform_indices = @transform_2, window_bounds = array<i64: 2, 1, 128>}]} {
    %c0 = arith.constant 0 : index
    %0 = memref.load %arg2[%c0] : memref<7xf32, #tpu.memory_space<smem>>
    %c0_0 = arith.constant 0 : index
    %c0_1 = arith.constant 0 : index
    %c0_2 = arith.constant 0 : index
    %1 = vector.load %arg3[%c0_0, %c0_1, %c0_2] : memref<2x7x128xf32, #tpu.memory_space<vmem>>, vector<2x1x128xf32>
    %2 = vector.shape_cast %1 : vector<2x1x128xf32> to vector<2x128xf32>
    %3 = vector.broadcast %0 : f32 to vector<2x128xf32>
    %4 = arith.mulf %3, %2 : vector<2x128xf32>
    %c1 = arith.constant 1 : index
    %5 = memref.load %arg2[%c1] : memref<7xf32, #tpu.memory_space<smem>>
    %c0_3 = arith.constant 0 : index
    %c1_4 = arith.constant 1 : index
    %c0_5 = arith.constant 0 : index
    %6 = vector.load %arg3[%c0_3, %c1_4, %c0_5] : memref<2x7x128xf32, #tpu.memory_space<vmem>>, vector<2x1x128xf32>
    %7 = vector.shape_cast %6 : vector<2x1x128xf32> to vector<2x128xf32>
    %8 = vector.broadcast %5 : f32 to vector<2x128xf32>
    %9 = arith.mulf %8, %7 : vector<2x128xf32>
    %10 = arith.addf %4, %9 : vector<2x128xf32>
    %c2 = arith.constant 2 : index
    %11 = memref.load %arg2[%c2] : memref<7xf32, #tpu.memory_space<smem>>
    %c0_6 = arith.constant 0 : index
    %c2_7 = arith.constant 2 : index
    %c0_8 = arith.constant 0 : index
    %12 = vector.load %arg3[%c0_6, %c2_7, %c0_8] : memref<2x7x128xf32, #tpu.memory_space<vmem>>, vector<2x1x128xf32>
    %13 = vector.shape_cast %12 : vector<2x1x128xf32> to vector<2x128xf32>
    %14 = vector.broadcast %11 : f32 to vector<2x128xf32>
    %15 = arith.mulf %14, %13 : vector<2x128xf32>
    %16 = arith.addf %10, %15 : vector<2x128xf32>
    %c3 = arith.constant 3 : index
    %17 = memref.load %arg2[%c3] : memref<7xf32, #tpu.memory_space<smem>>
    %c0_9 = arith.constant 0 : index
    %c3_10 = arith.constant 3 : index
    %c0_11 = arith.constant 0 : index
    %18 = vector.load %arg3[%c0_9, %c3_10, %c0_11] : memref<2x7x128xf32, #tpu.memory_space<vmem>>, vector<2x1x128xf32>
    %19 = vector.shape_cast %18 : vector<2x1x128xf32> to vector<2x128xf32>
    %20 = vector.broadcast %17 : f32 to vector<2x128xf32>
    %21 = arith.mulf %20, %19 : vector<2x128xf32>
    %22 = arith.addf %16, %21 : vector<2x128xf32>
    %c4 = arith.constant 4 : index
    %23 = memref.load %arg2[%c4] : memref<7xf32, #tpu.memory_space<smem>>
    %c0_12 = arith.constant 0 : index
    %c4_13 = arith.constant 4 : index
    %c0_14 = arith.constant 0 : index
    %24 = vector.load %arg3[%c0_12, %c4_13, %c0_14] : memref<2x7x128xf32, #tpu.memory_space<vmem>>, vector<2x1x128xf32>
    %25 = vector.shape_cast %24 : vector<2x1x128xf32> to vector<2x128xf32>
    %26 = vector.broadcast %23 : f32 to vector<2x128xf32>
    %27 = arith.mulf %26, %25 : vector<2x128xf32>
    %28 = arith.addf %22, %27 : vector<2x128xf32>
    %c5 = arith.constant 5 : index
    %29 = memref.load %arg2[%c5] : memref<7xf32, #tpu.memory_space<smem>>
    %c0_15 = arith.constant 0 : index
    %c5_16 = arith.constant 5 : index
    %c0_17 = arith.constant 0 : index
    %30 = vector.load %arg3[%c0_15, %c5_16, %c0_17] : memref<2x7x128xf32, #tpu.memory_space<vmem>>, vector<2x1x128xf32>
    %31 = vector.shape_cast %30 : vector<2x1x128xf32> to vector<2x128xf32>
    %32 = vector.broadcast %29 : f32 to vector<2x128xf32>
    %33 = arith.mulf %32, %31 : vector<2x128xf32>
    %34 = arith.addf %28, %33 : vector<2x128xf32>
    %c6 = arith.constant 6 : index
    %35 = memref.load %arg2[%c6] : memref<7xf32, #tpu.memory_space<smem>>
    %c0_18 = arith.constant 0 : index
    %c6_19 = arith.constant 6 : index
    %c0_20 = arith.constant 0 : index
    %36 = vector.load %arg3[%c0_18, %c6_19, %c0_20] : memref<2x7x128xf32, #tpu.memory_space<vmem>>, vector<2x1x128xf32>
    %37 = vector.shape_cast %36 : vector<2x1x128xf32> to vector<2x128xf32>
    %38 = vector.broadcast %35 : f32 to vector<2x128xf32>
    %39 = arith.mulf %38, %37 : vector<2x128xf32>
    %40 = arith.addf %34, %39 : vector<2x128xf32>
    %c0_21 = arith.constant 0 : index
    %c0_22 = arith.constant 0 : index
    %c0_23 = arith.constant 0 : index
    %41 = vector.load %arg4[%c0_21, %c0_22, %c0_23] : memref<2x1x128xf32, #tpu.memory_space<vmem>>, vector<2x1x128xf32>
    %42 = vector.shape_cast %41 : vector<2x1x128xf32> to vector<2x128xf32>
    %43 = vector.shape_cast %40 : vector<2x128xf32> to vector<2x1x128xf32>
    tpu.vector_store %arg4[%c0_21, %c0_22, %c0_23], %43 {strides = array<i32>} : memref<2x1x128xf32, #tpu.memory_space<vmem>>, vector<2x1x128xf32>,
    return
  }
  func.func @transform_0(%arg0: i32, %arg1: i32) -> i32 {
    %c0_i32 = arith.constant 0 : i32
    %c0_i32_0 = arith.constant 0 : i32
    return %c0_i32 : i32
  }
  func.func @transform_1(%arg0: i32, %arg1: i32) -> (i32, i32, i32) {
    %c0_i32 = arith.constant 0 : i32
    %c0_i32_0 = arith.constant 0 : i32
    return %arg0, %c0_i32, %arg1 : i32, i32, i32
  }
  func.func @transform_2(%arg0: i32, %arg1: i32) -> (i32, i32, i32) {
    %c0_i32 = arith.constant 0 : i32
    %c0_i32_0 = arith.constant 0 : i32
    return %arg0, %c0_i32, %arg1 : i32, i32, i32
  }
}

</mosaic_0001>

<llo_original>
// kernel: tpu_custom_call.1
$region0: #{tpu_custom_call.1}
  #allocation0 [shape = 'u32[]', space=smem, size = 0x4, offset = 0x4, fixed_abs, tag = 'smem constant byte address 0x4 - core index']
  #allocation1 [shape = 'u32[144,128]{1,0:T(1,128)}', space=vmem, size = 0x12000, scoped, tag = 'internal scratch']
  %s0 = inlined_call_operand.vmem [shape: f32[7], index: 0, kind: input, shape index: {}]
  %s1 = inlined_call_operand.vmem [shape: f32[2,7,256], index: 1, kind: input, shape index: {}]
  %s2 = inlined_call_operand.hbm [shape: f32[2,1,256], index: 2, kind: output, shape index: {}]
  %s3 = sld [smem:[#allocation0]]
  $region83: #{tpu_custom_call.1} parent=0
    _
  %s5 = ssub.s32 1, %s3
  %s6 = scalar_select 0, %s5, %s3
  $region1: #{tpu_custom_call.1} parent=0
    #allocation2 [shape = 'u8[512]{0}', space=smem, size = 0x200, scoped, tag = 'input window, operand 0, single buffered']
    #allocation3 [shape = 's32[2]{0}', space=sflag, size = 0x8, scoped, tag = 'scoped memory for tpu_custom_call.1']
    #allocation4 [shape = 's32[2]{0}', space=sflag, size = 0x8, scoped, tag = 'scoped memory for tpu_custom_call.1']
    #allocation5 [shape = 'u8[16384]{0}', space=vmem, size = 0x4000, scoped, tag = 'input window, operand 1']
    #allocation6 [shape = 'u8[2048]{0}', space=vmem, size = 0x800, scoped, tag = 'output window, operand 0']
    %7 = vsyncpa [#allocation4], 0
    %8 = vsyncpa [#allocation3], 0
    %s9 = scalar_lea.sflag [#allocation3], 1
    %10 = vsyncpa %s9, 0
    loop: start=0, step=1, limit=4
    $region2: #{tpu_custom_call.1} parent=1 // loop_pre_header
      _
    $region3: #{tpu_custom_call.1} parent=1 // loop_header
      %s12 = sphi 0, %s16
      %p13 = scmp.ge.s32.totalorder %s12, 4
      %s19 = sphi 0, %s31
      %s20 = sphi 0, %s27
      %s21 = sphi 0, %s19
      %s22 = sphi 0, %s20
      %s23 = sphi 0, %s21
      %s24 = sphi 0, %s22
      %s32 = sphi 0, %s32
      %s34 = sphi 0, %s32
      %s35 = sphi 0, %s34
      %s49 = sphi 0, %s35
      %s57 = sphi 0, %s59
      %s60 = sphi 0, %s57
      %s61 = sphi 0, %s60
      %s77 = sphi 0, %s61
      %s85 = sphi 0, %s87
      %s88 = sphi 0, %s85
      %s89 = sphi 0, %s88
      %s105 = sphi 0, %s89
    $region4: #{tpu_custom_call.1} parent=1 // loop_header_branch
      %15 = sbr.rel (%p13) target = $region8
    $region5: #{tpu_custom_call.1} parent=1 // loop_body
      %s17 = ssub.s32 %s12, 1
      %s18 = ssub.s32 %s12, 2
      %s25 = sadd.s32 1, %s20
      %p26 = scmp.ge.s32.totalorder %s25, 2
      %s27 = scalar_select %p26, 0, %s25
      %s28 = sadd.s32 1, %s19
      %s29 = scalar_select %p26, %s28, %s19
      %p30 = scmp.ge.s32.totalorder %s29, 1
      %s31 = scalar_select %p30, 0, %s29
      %s33 = sadd.s32 %s32, 1
      %p36 = scmp.eq.s32.totalorder %s12, 1
      %p37 = scmp.ne.s32.totalorder %s32, %s34
      %p38 = scmp.eq.s32.totalorder %s12, 0
      %p39 = por %p37, %p38
      %p40 = scmp.ne.s32.totalorder %s32, %s34
      %p41 = scmp.eq.s32.totalorder %s17, 1
      %p42 = por %p40, %p41
      %p43 = scmp.ne.s32.totalorder %s34, %s35
      %p44 = scmp.eq.s32.totalorder %s17, 0
      %p45 = por %p43, %p44
      %p46 = scmp.ne.s32.totalorder %s34, %s35
      %p47 = scmp.eq.s32.totalorder %s18, 1
      %p48 = por %p46, %p47
      %p50 = scmp.ne.s32.totalorder %s35, %s49
      %p51 = scmp.eq.s32.totalorder %s18, 0
      %p52 = por %p50, %p51
      %s53 = ssub.s32 %s19, %s31
      %s54 = ssub.s32 %s20, %s27
      %s55 = sor.u32 %s53, %s54
      %p56 = scmp.eq.s32.totalorder %s55, 0
      %s58 = sadd.s32 %s57, 1
      %s59 = scalar_select %p56, %s57, %s58
      %p62 = pneg %p56
      %p63 = scmp.eq.s32.totalorder %s12, 1
      %p64 = por %p62, %p63
      %p65 = scmp.ne.s32.totalorder %s57, %s60
      %p66 = scmp.eq.s32.totalorder %s12, 0
      %p67 = por %p65, %p66
      %p68 = scmp.ne.s32.totalorder %s57, %s60
      %p69 = scmp.eq.s32.totalorder %s17, 1
      %p70 = por %p68, %p69
      %p71 = scmp.ne.s32.totalorder %s60, %s61
      %p72 = scmp.eq.s32.totalorder %s17, 0
      %p73 = por %p71, %p72
      %p74 = scmp.ne.s32.totalorder %s60, %s61
      %p75 = scmp.eq.s32.totalorder %s18, 1
      %p76 = por %p74, %p75
      %p78 = scmp.ne.s32.totalorder %s61, %s77
      %p79 = scmp.eq.s32.totalorder %s18, 0
      %p80 = por %p78, %p79
      %s81 = ssub.s32 %s19, %s31
      %s82 = ssub.s32 %s20, %s27
      %s83 = sor.u32 %s81, %s82
      %p84 = scmp.eq.s32.totalorder %s83, 0
      %s86 = sadd.s32 %s85, 1
      %s87 = scalar_select %p84, %s85, %s86
      %p90 = pneg %p84
      %p91 = scmp.eq.s32.totalorder %s12, 1
      %p92 = por %p90, %p91
      %p93 = scmp.ne.s32.totalorder %s85, %s88
      %p94 = scmp.eq.s32.totalorder %s12, 0
      %p95 = por %p93, %p94
      %p96 = scmp.ne.s32.totalorder %s85, %s88
      %p97 = scmp.eq.s32.totalorder %s17, 1
      %p98 = por %p96, %p97
      %p99 = scmp.ne.s32.totalorder %s88, %s89
      %p100 = scmp.eq.s32.totalorder %s17, 0
      %p101 = por %p99, %p100
      %p102 = scmp.ne.s32.totalorder %s88, %s89
      %p103 = scmp.eq.s32.totalorder %s18, 1
      %p104 = por %p102, %p103
      %p106 = scmp.ne.s32.totalorder %s89, %s105
      %p107 = scmp.eq.s32.totalorder %s18, 0
      %p108 = por %p106, %p107
      %p109 = scmp.le.s32.totalorder 1, %s12
      %p110 = scmp.lt.s32.totalorder %s12, 3
      %p111 = pnand %p109, %p110
      %p112 = pneg %p111
      // Predicated region
      $region9: #{tpu_custom_call.1} parent=5 // pred_check
        _
      $region10: #{tpu_custom_call.1} parent=5 // pred_check_branch
        %114 = sbr.rel (%p111) target = $region12
      $region11: #{tpu_custom_call.1} parent=5 // pred_region
        %s115 = ssub.s32 %s12, 1
        // Predicated region
        $region13: #{tpu_custom_call.1} parent=11 // pred_check
          %p116 = pneg %p45
        $region14: #{tpu_custom_call.1} parent=11 // pred_check_branch
          %118 = sbr.rel (%p116) target = $region16
        $region15: #{tpu_custom_call.1} parent=11 // pred_region
          %s120 = ssub.s32 16, 16
          %121 = vsyncadd [#allocation4], %s120
          %s123 = sshll.u32 %s0, 4
          %s124 = int_to_ptr.vmem [resolvable:$true] %s123
          %126 = dma.vmem_to_smem %s124, 16, [#allocation2], [#allocation4]
        $region16: #{tpu_custom_call.1} parent=11 // pred_fallthru
          _
      $region12: #{tpu_custom_call.1} parent=5 // pred_fallthru
        _
      %p127 = scmp.lt.s32.totalorder %s12, 2
      // Predicated region
      $region17: #{tpu_custom_call.1} parent=5 // pred_check
        %p128 = pneg %p127
      $region18: #{tpu_custom_call.1} parent=5 // pred_check_branch
        %130 = sbr.rel (%p128) target = $region20
      $region19: #{tpu_custom_call.1} parent=5 // pred_region
        // Predicated region
        $region21: #{tpu_custom_call.1} parent=19 // pred_check
          %p131 = pneg %p67
        $region22: #{tpu_custom_call.1} parent=19 // pred_check_branch
          %133 = sbr.rel (%p131) target = $region24
        $region23: #{tpu_custom_call.1} parent=19 // pred_region
          %s134 = sand.u32 %s57, 1
          %s135 = sand.u32 %s57, 1
          %s136 = smul.addr %s135, 16
          %s137 = scalar_lea.vmem [#allocation5], %s136
          %s138 = smul.u32 2, %s19
          %s139 = smul.addr %s138, 2
          %s140 = sadd.s32 %s20, %s139
          %s141 = smul.addr %s140, 8
          %s142 = scalar_lea.vmem %s1, %s141
          // Predicated region
          $region25: #{tpu_custom_call.1} parent=23 // pred_check
            _
          $region26: #{tpu_custom_call.1} parent=23 // pred_check_branch
            %144 = sbr.rel (0) target = $region28
          $region27: #{tpu_custom_call.1} parent=23 // pred_region
            // Predicated region
            $region29: #{tpu_custom_call.1} parent=27 // pred_check
              _
            $region30: #{tpu_custom_call.1} parent=27 // pred_check_branch
              %146 = sbr.rel (0) target = $region32
            $region31: #{tpu_custom_call.1} parent=27 // pred_region
              // Predicated region
              $region44: #{tpu_custom_call.1} parent=31 // pred_check
                _
              $region45: #{tpu_custom_call.1} parent=31 // pred_check_branch
                %164 = sbr.rel (0) target = $region47
              $region46: #{tpu_custom_call.1} parent=31 // pred_region
                loop: start=0, step=1, limit=1
                $region48: #{tpu_custom_call.1} parent=46 // loop_pre_header
                  _
                $region49: #{tpu_custom_call.1} parent=46 // loop_header
                  %s166 = sphi 0, %s170
                  %p167 = scmp.ge.s32.totalorder %s166, 1
                  %s171 = sphi %s142, %s142
                  %s172 = sphi %s137, %s137
                $region50: #{tpu_custom_call.1} parent=46 // loop_header_branch
                  %169 = sbr.rel (%p167) target = $region54
                $region51: #{tpu_custom_call.1} parent=46 // loop_body
                  %v173 = vld [vmem:[%s171] sm:$0xff]
                  %174 = vst [vmem:[%s172] sm:$0xff] %v173
                  %v175 = vld [vmem:[%s171 + $0x10] sm:$0xff]
                  %176 = vst [vmem:[%s172 + $0x8] sm:$0xff] %v175
                $region52: #{tpu_custom_call.1} parent=46 // loop_footer
                  %s170 = sadd.s32 1, %s166
                $region53: #{tpu_custom_call.1} parent=46 // loop_footer_branch
                  %165 = sbr.rel target = $region49
                $region54: #{tpu_custom_call.1} parent=46 // loop_exit
                  _
              $region47: #{tpu_custom_call.1} parent=31 // pred_fallthru
                _
              // Predicated region
              $region55: #{tpu_custom_call.1} parent=31 // pred_check
                _
              $region56: #{tpu_custom_call.1} parent=31 // pred_check_branch
                %178 = sbr.rel target = $region58
              $region57: #{tpu_custom_call.1} parent=31 // pred_region
                _
              $region58: #{tpu_custom_call.1} parent=31 // pred_fallthru
                _
            $region32: #{tpu_custom_call.1} parent=27 // pred_fallthru
              _
            // Predicated region
            $region33: #{tpu_custom_call.1} parent=27 // pred_check
              _
            $region34: #{tpu_custom_call.1} parent=27 // pred_check_branch
              %148 = sbr.rel target = $region36
            $region35: #{tpu_custom_call.1} parent=27 // pred_region
              %s150 = ssub.s32 256, 1
              loop: start=0, step=1, limit=1
              $region37: #{tpu_custom_call.1} parent=35 // loop_pre_header
                _
              $region38: #{tpu_custom_call.1} parent=35 // loop_header
                %s152 = sphi 0, %s156
                %p153 = scmp.ge.s32.totalorder %s152, 1
                %s157 = sphi %s142, %s142
                %s158 = sphi %s137, %s137
              $region39: #{tpu_custom_call.1} parent=35 // loop_header_branch
                %155 = sbr.rel (%p153) target = $region43
              $region40: #{tpu_custom_call.1} parent=35 // loop_body
                %v159 = vld [vmem:[%s157] sm:%s150]
                %160 = vst [vmem:[%s158] sm:%s150] %v159
                %v161 = vld [vmem:[%s157 + $0x10] sm:%s150]
                %162 = vst [vmem:[%s158 + $0x8] sm:%s150] %v161
              $region41: #{tpu_custom_call.1} parent=35 // loop_footer
                %s156 = sadd.s32 1, %s152
              $region42: #{tpu_custom_call.1} parent=35 // loop_footer_branch
                %151 = sbr.rel target = $region38
              $region43: #{tpu_custom_call.1} parent=35 // loop_exit
                _
            $region36: #{tpu_custom_call.1} parent=27 // pred_fallthru
              _
          $region28: #{tpu_custom_call.1} parent=23 // pred_fallthru
            _
          %179 = vnop
        $region24: #{tpu_custom_call.1} parent=19 // pred_fallthru
          _
      $region20: #{tpu_custom_call.1} parent=5 // pred_fallthru
        _
      %p180 = scmp.le.s32.totalorder 1, %s12
      %p181 = scmp.lt.s32.totalorder %s12, 3
      %p182 = pnand %p180, %p181
      %p183 = pneg %p182
      // Predicated region
      $region59: #{tpu_custom_call.1} parent=5 // pred_check
        _
      $region60: #{tpu_custom_call.1} parent=5 // pred_check_branch
        %185 = sbr.rel (%p182) target = $region62
      $region61: #{tpu_custom_call.1} parent=5 // pred_region
        %s186 = ssub.s32 %s12, 1
        // Predicated region
        $region63: #{tpu_custom_call.1} parent=61 // pred_check
          %p187 = pneg %p45
        $region64: #{tpu_custom_call.1} parent=61 // pred_check_branch
          %189 = sbr.rel (%p187) target = $region66
        $region65: #{tpu_custom_call.1} parent=61 // pred_region
          %190 = dma.done [#allocation4], 16
        $region66: #{tpu_custom_call.1} parent=61 // pred_fallthru
          _
        %s191 = sand.u32 %s60, 1
        %s192 = sand.u32 %s60, 1
        %s193 = smul.addr %s192, 16
        %s194 = scalar_lea.vmem [#allocation5], %s193
        // Predicated region
        $region67: #{tpu_custom_call.1} parent=61 // pred_check
          %p195 = pneg %p73
        $region68: #{tpu_custom_call.1} parent=61 // pred_check_branch
          %197 = sbr.rel (%p195) target = $region70
        $region69: #{tpu_custom_call.1} parent=61 // pred_region
          _
        $region70: #{tpu_custom_call.1} parent=61 // pred_fallthru
          _
        %198 = sfence
        %p199 = pneg %p45
        %p200 = pneg %p42
        %s201 = sand.u32 %s60, 1
        %s202 = sand.u32 %s60, 1
        %s203 = smul.addr %s202, 16
        %s204 = scalar_lea.vmem [#allocation5], %s203
        %p205 = pneg %p73
        %p206 = pneg %p70
        %p207 = pneg %p101
        %p208 = pneg %p98
        %s209 = sand.u32 %s88, 1
        %s210 = scalar_lea.sflag [#allocation3], %s209
        %s211 = sand.u32 %s88, 1
        %s212 = smul.addr %s211, 2
        %s213 = scalar_lea.vmem [#allocation6], %s212
        %s214 = smul.u32 2, %s21
        %s215 = smul.u32 2, %s21
        %s216 = sld [smem:[#allocation2]]
        %v217 = vld [vmem:[%s194] sm:$0x1]
        %v218 = vld [vmem:[%s194 + $0x8] sm:$0x1]
        %v219 = vstv %s216
        %v220 = vmul.f32 %v219, %v217
        %v221 = vmul.f32 %v219, %v218
        %s222 = sld [smem:[#allocation2 + $0x1]]
        %v223 = vld [vmem:[%s194 + $0x1] sm:$0x1]
        %v224 = vld [vmem:[%s194 + $0x9] sm:$0x1]
        %v225 = vstv %s222
        %v226 = vmul.f32 %v225, %v223
        %v227 = vmul.f32 %v225, %v224
        %v228 = vadd.f32 %v220, %v226
        %v229 = vadd.f32 %v221, %v227
        %s230 = sld [smem:[#allocation2 + $0x2]]
        %v231 = vld [vmem:[%s194 + $0x2] sm:$0x1]
        %v232 = vld [vmem:[%s194 + $0xa] sm:$0x1]
        %v233 = vstv %s230
        %v234 = vmul.f32 %v233, %v231
        %v235 = vmul.f32 %v233, %v232
        %v236 = vadd.f32 %v228, %v234
        %v237 = vadd.f32 %v229, %v235
        %s238 = sld [smem:[#allocation2 + $0x3]]
        %v239 = vld [vmem:[%s194 + $0x3] sm:$0x1]
        %v240 = vld [vmem:[%s194 + $0xb] sm:$0x1]
        %v241 = vstv %s238
        %v242 = vmul.f32 %v241, %v239
        %v243 = vmul.f32 %v241, %v240
        %v244 = vadd.f32 %v236, %v242
        %v245 = vadd.f32 %v237, %v243
        %s246 = sld [smem:[#allocation2 + $0x4]]
        %v247 = vld [vmem:[%s194 + $0x4] sm:$0x1]
        %v248 = vld [vmem:[%s194 + $0xc] sm:$0x1]
        %v249 = vstv %s246
        %v250 = vmul.f32 %v249, %v247
        %v251 = vmul.f32 %v249, %v248
        %v252 = vadd.f32 %v244, %v250
        %v253 = vadd.f32 %v245, %v251
        %s254 = sld [smem:[#allocation2 + $0x5]]
        %v255 = vld [vmem:[%s194 + $0x5] sm:$0x1]
        %v256 = vld [vmem:[%s194 + $0xd] sm:$0x1]
        %v257 = vstv %s254
        %v258 = vmul.f32 %v257, %v255
        %v259 = vmul.f32 %v257, %v256
        %v260 = vadd.f32 %v252, %v258
        %v261 = vadd.f32 %v253, %v259
        %s262 = sld [smem:[#allocation2 + $0x6]]
        %v263 = vld [vmem:[%s194 + $0x6] sm:$0x1]
        %v264 = vld [vmem:[%s194 + $0xe] sm:$0x1]
        %v265 = vstv %s262
        %v266 = vmul.f32 %v265, %v263
        %v267 = vmul.f32 %v265, %v264
        %v268 = vadd.f32 %v260, %v266
        %v269 = vadd.f32 %v261, %v267
        %270 = vst [vmem:[%s213] sm:$0x1] %v268
        %271 = vst [vmem:[%s213 + $0x1] sm:$0x1] %v269
        %s272 = sand.u32 %s88, 1
        %s273 = scalar_lea.sflag [#allocation3], %s272
        %s274 = sand.u32 %s88, 1
        %s275 = smul.addr %s274, 2
        %s276 = scalar_lea.vmem [#allocation6], %s275
        // Predicated region
        $region71: #{tpu_custom_call.1} parent=61 // pred_check
          %p277 = pneg %p98
        $region72: #{tpu_custom_call.1} parent=61 // pred_check_branch
          %279 = sbr.rel (%p277) target = $region74
        $region73: #{tpu_custom_call.1} parent=61 // pred_region
          %s280 = smul.u32 2, %s21
          %s282 = ssub.s32 32, 32
          %283 = vsyncadd %s273, %s282
          %s284 = smul.addr %s280, 2
          %s285 = sadd.s32 %s22, %s284
          %s286 = smul.addr %s285, 16
          %s287 = scalar_lea.hbm %s2, %s286
          %s288 = sshll.u32 %s276, 4
          %s289 = int_to_ptr.vmem [resolvable:$true] %s288
          %294 = dma.vmem_to_hbm [thread:$0]  %s289, 32, %s287, %s273, 16, 32, 1
        $region74: #{tpu_custom_call.1} parent=61 // pred_fallthru
          _
      $region62: #{tpu_custom_call.1} parent=5 // pred_fallthru
        _
      %p295 = scmp.le.s32.totalorder 2, %s12
      // Predicated region
      $region75: #{tpu_custom_call.1} parent=5 // pred_check
        %p296 = pneg %p295
      $region76: #{tpu_custom_call.1} parent=5 // pred_check_branch
        %298 = sbr.rel (%p296) target = $region78
      $region77: #{tpu_custom_call.1} parent=5 // pred_region
        %s299 = ssub.s32 %s12, 2
        // Predicated region
        $region79: #{tpu_custom_call.1} parent=77 // pred_check
          %p300 = pneg %p104
        $region80: #{tpu_custom_call.1} parent=77 // pred_check_branch
          %302 = sbr.rel (%p300) target = $region82
        $region81: #{tpu_custom_call.1} parent=77 // pred_region
          %s303 = sand.u32 %s89, 1
          %s304 = scalar_lea.sflag [#allocation3], %s303
          %s305 = sand.u32 %s89, 1
          %s306 = smul.addr %s305, 2
          %s307 = scalar_lea.vmem [#allocation6], %s306
          %308 = dma.done %s304, 32
        $region82: #{tpu_custom_call.1} parent=77 // pred_fallthru
          _
      $region78: #{tpu_custom_call.1} parent=5 // pred_fallthru
        _
    $region6: #{tpu_custom_call.1} parent=1 // loop_footer
      %s16 = sadd.s32 1, %s12
    $region7: #{tpu_custom_call.1} parent=1 // loop_footer_branch
      %11 = sbr.rel target = $region3
    $region8: #{tpu_custom_call.1} parent=1 // loop_exit
      _
    %309 = vsyncpa [#allocation3], 1
    %s310 = scalar_lea.sflag [#allocation3], 1
    %311 = vsyncpa %s310, 1
    %312 = vsyncpa [#allocation4], 1
    %s313 = scalar_lea.sflag [#allocation4], 1
    %314 = vsyncpa %s313, 1

</llo_original>
